<compile_context>
chip_gen: v6e
topology: v6e:2x2x1
jax: 0.10.0
libtpu: 0.0.40
codegen_flags: <defaults>
</compile_context>

<pallas_src>
import functools

import jax
import jax.numpy as jnp
from jax.experimental import pallas as pl
from jax.experimental.pallas import tpu as pltpu


def _round_up(v: int, m: int) -> int:
    return ((v + m - 1) // m) * m


def _make_grn_kernel(has_context: bool, project_residual: bool):
    """Build the fused GRN kernel for a given configuration."""

    def kernel(*refs):
        it = iter(refs)
        x_ref = next(it)                       # (tile_b, input_dim)
        ctx_ref = next(it) if has_context else None   # (tile_b, context_dim)
        if project_residual:
            skip_w = next(it)                  # (input_dim, output_dim)
            skip_b = next(it)                  # (1, output_dim)
        fc1_w = next(it)                       # (input_dim, hidden_dim)
        fc1_b = next(it)                       # (1, hidden_dim)
        ctx_w = next(it) if has_context else None     # (context_dim, hidden_dim)
        fc2_w = next(it)                       # (hidden_dim, output_dim)
        fc2_b = next(it)                       # (1, output_dim)
        g1_w = next(it)                        # (output_dim, output_dim)
        g1_b = next(it)                        # (1, output_dim)
        g2_w = next(it)                        # (output_dim, output_dim)
        g2_b = next(it)                        # (1, output_dim)
        gamma = next(it)                       # (1, output_dim)
        beta = next(it)                        # (1, output_dim)
        o_ref = next(it)                       # (tile_b, output_dim)

        x = x_ref[...].astype(jnp.float32)

        # Residual path.
        if project_residual:
            residual = (
                jnp.dot(x, skip_w[...], preferred_element_type=jnp.float32)
                + skip_b[...]
            )
        else:
            residual = x

        # fc1 (+ context projection) -> ELU.
        h = jnp.dot(x, fc1_w[...], preferred_element_type=jnp.float32) + fc1_b[...]
        if has_context:
            c = ctx_ref[...].astype(jnp.float32)
            h = h + jnp.dot(c, ctx_w[...], preferred_element_type=jnp.float32)
        h = jnp.where(h > 0.0, h, jnp.exp(h) - 1.0)  # ELU(alpha=1)

        # fc2.  TODO(synk): dropout is an inference no-op; training-mode dropout
        # (p=0.05) is not implemented in-kernel.
        y = jnp.dot(h, fc2_w[...], preferred_element_type=jnp.float32) + fc2_b[...]

        # GatedLinearUnit: sigmoid(fc1(y)) * fc2(y).
        a = jnp.dot(y, g1_w[...], preferred_element_type=jnp.float32) + g1_b[...]
        sig = 1.0 / (1.0 + jnp.exp(-a))
        lin = jnp.dot(y, g2_w[...], preferred_element_type=jnp.float32) + g2_b[...]

        # Residual add + LayerNorm(output_dim), eps = 1e-5 (PyTorch default).
        z = sig * lin + residual
        mean = jnp.mean(z, axis=-1, keepdims=True)
        cen = z - mean
        var = jnp.mean(cen * cen, axis=-1, keepdims=True)
        zn = cen * jax.lax.rsqrt(var + 1e-5)
        o_ref[...] = (zn * gamma[...] + beta[...]).astype(o_ref.dtype)

    return kernel


@functools.partial(jax.jit, static_argnames=("tile_b",))
def _grn_pallas(x2, ctx2, params, *, tile_b):
    """x2: (N, input_dim) f32, ctx2: (N, context_dim) f32 or None."""
    has_context = ctx2 is not None
    project_residual = "skip_w" in params

    n_rows, input_dim = x2.shape
    hidden_dim = params["fc1_w"].shape[1]
    output_dim = params["fc2_w"].shape[1]
    del hidden_dim  # (shapes come from the params directly)

    # Row tiling: biggest tile <= tile_b that covers N (pad N up to a multiple).
    tb = max(8, min(tile_b, _round_up(n_rows, 8)))
    n_pad = _round_up(n_rows, tb)
    if n_pad != n_rows:
        x2 = jnp.pad(x2, ((0, n_pad - n_rows), (0, 0)))
        if has_context:
            ctx2 = jnp.pad(ctx2, ((0, n_pad - n_rows), (0, 0)))
    grid = (n_pad // tb,)

    def row_spec(d):
        return pl.BlockSpec((tb, d), lambda i: (i, 0))

    def const_spec(arr):
        return pl.BlockSpec(arr.shape, lambda i: (0, 0))

    operands = [x2]
    in_specs = [row_spec(input_dim)]
    if has_context:
        operands.append(ctx2)
        in_specs.append(row_spec(ctx2.shape[1]))

    def add_const(name):
        operands.append(params[name])
        in_specs.append(const_spec(params[name]))

    if project_residual:
        add_const("skip_w")
        add_const("skip_b")
    add_const("fc1_w")
    add_const("fc1_b")
    if has_context:
        add_const("ctx_w")
    add_const("fc2_w")
    add_const("fc2_b")
    add_const("glu1_w")
    add_const("glu1_b")
    add_const("glu2_w")
    add_const("glu2_b")
    add_const("ln_gamma")
    add_const("ln_beta")

    kernel = _make_grn_kernel(has_context, project_residual)

    out = pl.pallas_call(
        kernel,
        out_shape=jax.ShapeDtypeStruct((n_pad, output_dim), x2.dtype),
        grid_spec=pltpu.PrefetchScalarGridSpec(
            num_scalar_prefetch=0,
            grid=grid,
            in_specs=in_specs,
            out_specs=pl.BlockSpec((tb, output_dim), lambda i: (i, 0)),
        ),
        compiler_params=pltpu.CompilerParams(
            dimension_semantics=("parallel",),
        ),
    )(*operands)

    return out[:n_rows]


def gated_residual_network(x, params, context=None, *, tile_b=256):
    """Fused GRN forward.

    Args:
      x:       (..., input_dim)            -- e.g. (batch, time, input_dim)
      context: (..., context_dim) or None  -- same leading dims as x
      params:  dict of weights.  Linear weights are stored transposed, i.e.
               shape (in_features, out_features); biases shape (1, out_features).
               Keys: fc1_w, fc1_b, fc2_w, fc2_b, glu1_w, glu1_b, glu2_w, glu2_b,
               ln_gamma, ln_beta, and optionally skip_w, skip_b (if
               input_dim != output_dim) and ctx_w (if context is given).
      tile_b:  max rows per grid step.

    Returns:
      (..., output_dim) array.
    """
    lead = x.shape[:-1]
    input_dim = x.shape[-1]
    output_dim = params["fc2_w"].shape[1]

    x2 = x.reshape(-1, input_dim)
    ctx2 = None
    if context is not None:
        ctx2 = context.reshape(-1, context.shape[-1])

    out2 = _grn_pallas(x2, ctx2, params, tile_b=tile_b)
    return out2.reshape(lead + (output_dim,))


def _reference(x, params, context=None):
    """Pure-JAX reference (HIGHEST matmul precision)."""
    hp = jax.lax.Precision.HIGHEST
    lead = x.shape[:-1]
    x2 = x.reshape(-1, x.shape[-1]).astype(jnp.float32)

    if "skip_w" in params:
        residual = jnp.dot(x2, params["skip_w"], precision=hp) + params["skip_b"]
    else:
        residual = x2

    h = jnp.dot(x2, params["fc1_w"], precision=hp) + params["fc1_b"]
    if context is not None:
        c2 = context.reshape(-1, context.shape[-1]).astype(jnp.float32)
        h = h + jnp.dot(c2, params["ctx_w"], precision=hp)
    h = jnp.where(h > 0.0, h, jnp.exp(h) - 1.0)

    y = jnp.dot(h, params["fc2_w"], precision=hp) + params["fc2_b"]

    a = jnp.dot(y, params["glu1_w"], precision=hp) + params["glu1_b"]
    sig = 1.0 / (1.0 + jnp.exp(-a))
    lin = jnp.dot(y, params["glu2_w"], precision=hp) + params["glu2_b"]

    z = sig * lin + residual
    mean = jnp.mean(z, axis=-1, keepdims=True)
    var = jnp.mean((z - mean) ** 2, axis=-1, keepdims=True)
    zn = (z - mean) / jnp.sqrt(var + 1e-5)
    out = zn * params["ln_gamma"] + params["ln_beta"]
    return out.reshape(lead + (params["fc2_w"].shape[1],))


if __name__ == "__main__":
    # Small TFT-like configuration: input_dim != output_dim (so the residual is
    # projected) and a context vector is provided.
    batch, seq = 2, 8
    input_dim, hidden_dim, output_dim, context_dim = 32, 32, 64, 16

    key = jax.random.PRNGKey(0)
    keys = jax.random.split(key, 16)
    s = 0.25  # modest init scale to keep activations well-behaved

    params = {
        "skip_w": s * jax.random.normal(keys[0], (input_dim, output_dim), jnp.float32),
        "skip_b": s * jax.random.normal(keys[1], (1, output_dim), jnp.float32),
        "fc1_w": s * jax.random.normal(keys[2], (input_dim, hidden_dim), jnp.float32),
        "fc1_b": s * jax.random.normal(keys[3], (1, hidden_dim), jnp.float32),
        "ctx_w": s * jax.random.normal(keys[4], (context_dim, hidden_dim), jnp.float32),
        "fc2_w": s * jax.random.normal(keys[5], (hidden_dim, output_dim), jnp.float32),
        "fc2_b": s * jax.random.normal(keys[6], (1, output_dim), jnp.float32),
        "glu1_w": s * jax.random.normal(keys[7], (output_dim, output_dim), jnp.float32),
        "glu1_b": s * jax.random.normal(keys[8], (1, output_dim), jnp.float32),
        "glu2_w": s * jax.random.normal(keys[9], (output_dim, output_dim), jnp.float32),
        "glu2_b": s * jax.random.normal(keys[10], (1, output_dim), jnp.float32),
        "ln_gamma": 1.0 + 0.1 * jax.random.normal(keys[11], (1, output_dim), jnp.float32),
        "ln_beta": 0.1 * jax.random.normal(keys[12], (1, output_dim), jnp.float32),
    }

    x = jax.random.normal(keys[13], (batch, seq, input_dim), jnp.float32)
    context = jax.random.normal(keys[14], (batch, seq, context_dim), jnp.float32)

    out = gated_residual_network(x, params, context)
    out = jax.block_until_ready(out)

    ref = _reference(x, params, context)
    assert out.shape == (batch, seq, output_dim)
    assert jnp.allclose(out, ref, atol=1e-3, rtol=1e-3), float(
        jnp.max(jnp.abs(out - ref))
    )

    print("KERNEL_OK")
</pallas_src>

<mosaic_0001>
module attributes {stable_mosaic.version = 11 : i64} {
  func.func @kernel(%arg0: i32, %arg1: memref<16x32xf32, #tpu.memory_space<vmem>>, %arg2: memref<16x16xf32, #tpu.memory_space<vmem>>, %arg3: memref<32x64xf32, #tpu.memory_space<vmem>>, %arg4: memref<1x64xf32, #tpu.memory_space<vmem>>, %arg5: memref<32x32xf32, #tpu.memory_space<vmem>>, %arg6: memref<1x32xf32, #tpu.memory_space<vmem>>, %arg7: memref<16x32xf32, #tpu.memory_space<vmem>>, %arg8: memref<32x64xf32, #tpu.memory_space<vmem>>, %arg9: memref<1x64xf32, #tpu.memory_space<vmem>>, %arg10: memref<64x64xf32, #tpu.memory_space<vmem>>, %arg11: memref<1x64xf32, #tpu.memory_space<vmem>>, %arg12: memref<64x64xf32, #tpu.memory_space<vmem>>, %arg13: memref<1x64xf32, #tpu.memory_space<vmem>>, %arg14: memref<1x64xf32, #tpu.memory_space<vmem>>, %arg15: memref<1x64xf32, #tpu.memory_space<vmem>>, %arg16: memref<16x64xf32, #tpu.memory_space<vmem>>) attributes {dimension_semantics = [#tpu.dimension_semantics<parallel>], iteration_bounds = array<i64: 1>, scalar_prefetch = 0 : i64, scratch_operands = 0 : i64, tpu.core_type = #tpu.core_type<tc>, window_params = [{transform_indices = @transform_0, window_bounds = array<i64: 16, 32>}, {transform_indices = @transform_1, window_bounds = array<i64: 16, 16>}, {pipeline_mode = #tpu.pipeline_mode<synchronous>, transform_indices = @transform_2, window_bounds = array<i64: 32, 64>}, {pipeline_mode = #tpu.pipeline_mode<synchronous>, transform_indices = @transform_3, window_bounds = array<i64: 1, 64>}, {pipeline_mode = #tpu.pipeline_mode<synchronous>, transform_indices = @transform_4, window_bounds = array<i64: 32, 32>}, {pipeline_mode = #tpu.pipeline_mode<synchronous>, transform_indices = @transform_5, window_bounds = array<i64: 1, 32>}, {pipeline_mode = #tpu.pipeline_mode<synchronous>, transform_indices = @transform_6, window_bounds = array<i64: 16, 32>}, {pipeline_mode = #tpu.pipeline_mode<synchronous>, transform_indices = @transform_7, window_bounds = array<i64: 32, 64>}, {pipeline_mode = #tpu.pipeline_mode<synchronous>, transform_indices = @transform_8, window_bounds = array<i64: 1, 64>}, {pipeline_mode = #tpu.pipeline_mode<synchronous>, transform_indices = @transform_9, window_bounds = array<i64: 64, 64>}, {pipeline_mode = #tpu.pipeline_mode<synchronous>, transform_indices = @transform_10, window_bounds = array<i64: 1, 64>}, {pipeline_mode = #tpu.pipeline_mode<synchronous>, transform_indices = @transform_11, window_bounds = array<i64: 64, 64>}, {pipeline_mode = #tpu.pipeline_mode<synchronous>, transform_indices = @transform_12, window_bounds = array<i64: 1, 64>}, {pipeline_mode = #tpu.pipeline_mode<synchronous>, transform_indices = @transform_13, window_bounds = array<i64: 1, 64>}, {pipeline_mode = #tpu.pipeline_mode<synchronous>, transform_indices = @transform_14, window_bounds = array<i64: 1, 64>}, {transform_indices = @transform_15, window_bounds = array<i64: 16, 64>}]} {
    %c0 = arith.constant 0 : index
    %c0_0 = arith.constant 0 : index
    %0 = vector.load %arg1[%c0, %c0_0] : memref<16x32xf32, #tpu.memory_space<vmem>>, vector<16x32xf32>
    %c0_1 = arith.constant 0 : index
    %c0_2 = arith.constant 0 : index
    %1 = vector.load %arg3[%c0_1, %c0_2] : memref<32x64xf32, #tpu.memory_space<vmem>>, vector<32x64xf32>
    %cst = arith.constant dense<0.000000e+00> : vector<16x64xf32>
    %2 = tpu.matmul %0, %1, %cst {dimension_numbers = #tpu.dot_dimension_numbers<[1], [0], [0], [1], [0, 0, 1, 1], [], []>} : vector<16x32xf32>, vector<32x64xf32>, vector<16x64xf32> -> vector<16x64xf32>
    %c0_3 = arith.constant 0 : index
    %c0_4 = arith.constant 0 : index
    %3 = vector.load %arg4[%c0_3, %c0_4] : memref<1x64xf32, #tpu.memory_space<vmem>>, vector<1x64xf32>
    %4 = vector.broadcast %3 : vector<1x64xf32> to vector<16x64xf32>
    %5 = arith.addf %2, %4 : vector<16x64xf32>
    %c0_5 = arith.constant 0 : index
    %c0_6 = arith.constant 0 : index
    %6 = vector.load %arg5[%c0_5, %c0_6] : memref<32x32xf32, #tpu.memory_space<vmem>>, vector<32x32xf32>
    %cst_7 = arith.constant dense<0.000000e+00> : vector<16x32xf32>
    %7 = tpu.matmul %0, %6, %cst_7 {dimension_numbers = #tpu.dot_dimension_numbers<[1], [0], [0], [1], [0, 0, 1, 1], [], []>} : vector<16x32xf32>, vector<32x32xf32>, vector<16x32xf32> -> vector<16x32xf32>
    %c0_8 = arith.constant 0 : index
    %c0_9 = arith.constant 0 : index
    %8 = vector.load %arg6[%c0_8, %c0_9] : memref<1x32xf32, #tpu.memory_space<vmem>>, vector<1x32xf32>
    %9 = vector.broadcast %8 : vector<1x32xf32> to vector<16x32xf32>
    %10 = arith.addf %7, %9 : vector<16x32xf32>
    %c0_10 = arith.constant 0 : index
    %c0_11 = arith.constant 0 : index
    %11 = vector.load %arg2[%c0_10, %c0_11] : memref<16x16xf32, #tpu.memory_space<vmem>>, vector<16x16xf32>
    %c0_12 = arith.constant 0 : index
    %c0_13 = arith.constant 0 : index
    %12 = vector.load %arg7[%c0_12, %c0_13] : memref<16x32xf32, #tpu.memory_space<vmem>>, vector<16x32xf32>
    %cst_14 = arith.constant dense<0.000000e+00> : vector<16x32xf32>
    %13 = tpu.matmul %11, %12, %cst_14 {dimension_numbers = #tpu.dot_dimension_numbers<[1], [0], [0], [1], [0, 0, 1, 1], [], []>} : vector<16x16xf32>, vector<16x32xf32>, vector<16x32xf32> -> vector<16x32xf32>
    %14 = arith.addf %10, %13 : vector<16x32xf32>
    %cst_15 = arith.constant 0.000000e+00 : f32
    %15 = vector.broadcast %cst_15 : f32 to vector<16x32xf32>
    %16 = arith.cmpf ogt, %14, %15 : vector<16x32xf32>
    %17 = math.exp %14 : vector<16x32xf32>
    %cst_16 = arith.constant 1.000000e+00 : f32
    %18 = vector.broadcast %cst_16 : f32 to vector<16x32xf32>
    %19 = arith.subf %17, %18 : vector<16x32xf32>
    %20 = arith.select %16, %14, %19 : vector<16x32xi1>, vector<16x32xf32>
    %c0_17 = arith.constant 0 : index
    %c0_18 = arith.constant 0 : index
    %21 = vector.load %arg8[%c0_17, %c0_18] : memref<32x64xf32, #tpu.memory_space<vmem>>, vector<32x64xf32>
    %cst_19 = arith.constant dense<0.000000e+00> : vector<16x64xf32>
    %22 = tpu.matmul %20, %21, %cst_19 {dimension_numbers = #tpu.dot_dimension_numbers<[1], [0], [0], [1], [0, 0, 1, 1], [], []>} : vector<16x32xf32>, vector<32x64xf32>, vector<16x64xf32> -> vector<16x64xf32>
    %c0_20 = arith.constant 0 : index
    %c0_21 = arith.constant 0 : index
    %23 = vector.load %arg9[%c0_20, %c0_21] : memref<1x64xf32, #tpu.memory_space<vmem>>, vector<1x64xf32>
    %24 = vector.broadcast %23 : vector<1x64xf32> to vector<16x64xf32>
    %25 = arith.addf %22, %24 : vector<16x64xf32>
    %c0_22 = arith.constant 0 : index
    %c0_23 = arith.constant 0 : index
    %26 = vector.load %arg10[%c0_22, %c0_23] : memref<64x64xf32, #tpu.memory_space<vmem>>, vector<64x64xf32>
    %cst_24 = arith.constant dense<0.000000e+00> : vector<16x64xf32>
    %27 = tpu.matmul %25, %26, %cst_24 {dimension_numbers = #tpu.dot_dimension_numbers<[1], [0], [0], [1], [0, 0, 1, 1], [], []>} : vector<16x64xf32>, vector<64x64xf32>, vector<16x64xf32> -> vector<16x64xf32>
    %c0_25 = arith.constant 0 : index
    %c0_26 = arith.constant 0 : index
    %28 = vector.load %arg11[%c0_25, %c0_26] : memref<1x64xf32, #tpu.memory_space<vmem>>, vector<1x64xf32>
    %29 = vector.broadcast %28 : vector<1x64xf32> to vector<16x64xf32>
    %30 = arith.addf %27, %29 : vector<16x64xf32>
    %cst_27 = arith.constant 0.000000e+00 : f32
    %31 = vector.broadcast %cst_27 : f32 to vector<16x64xf32>
    %32 = arith.subf %31, %30 : vector<16x64xf32>
    %33 = math.exp %32 : vector<16x64xf32>
    %cst_28 = arith.constant 1.000000e+00 : f32
    %34 = vector.broadcast %cst_28 : f32 to vector<16x64xf32>
    %35 = arith.addf %34, %33 : vector<16x64xf32>
    %cst_29 = arith.constant 1.000000e+00 : f32
    %36 = vector.broadcast %cst_29 : f32 to vector<16x64xf32>
    %37 = arith.divf %36, %35 : vector<16x64xf32>
    %c0_30 = arith.constant 0 : index
    %c0_31 = arith.constant 0 : index
    %38 = vector.load %arg12[%c0_30, %c0_31] : memref<64x64xf32, #tpu.memory_space<vmem>>, vector<64x64xf32>
    %cst_32 = arith.constant dense<0.000000e+00> : vector<16x64xf32>
    %39 = tpu.matmul %25, %38, %cst_32 {dimension_numbers = #tpu.dot_dimension_numbers<[1], [0], [0], [1], [0, 0, 1, 1], [], []>} : vector<16x64xf32>, vector<64x64xf32>, vector<16x64xf32> -> vector<16x64xf32>
    %c0_33 = arith.constant 0 : index
    %c0_34 = arith.constant 0 : index
    %40 = vector.load %arg13[%c0_33, %c0_34] : memref<1x64xf32, #tpu.memory_space<vmem>>, vector<1x64xf32>
    %41 = vector.broadcast %40 : vector<1x64xf32> to vector<16x64xf32>
    %42 = arith.addf %39, %41 : vector<16x64xf32>
    %43 = arith.mulf %37, %42 : vector<16x64xf32>
    %44 = arith.addf %43, %5 : vector<16x64xf32>
    %cst_35 = arith.constant dense<0.000000e+00> : vector<16xf32>
    %45 = vector.multi_reduction <add>, %44, %cst_35 [1] : vector<16x64xf32> to vector<16xf32>
    %46 = vector.shape_cast %45 : vector<16xf32> to vector<16x1xf32>
    %cst_36 = arith.constant 6.400000e+01 : f32
    %47 = vector.broadcast %cst_36 : f32 to vector<16x1xf32>
    %48 = arith.divf %46, %47 : vector<16x1xf32>
    %49 = vector.broadcast %48 : vector<16x1xf32> to vector<16x64xf32>
    %50 = arith.subf %44, %49 : vector<16x64xf32>
    %51 = arith.mulf %50, %50 : vector<16x64xf32>
    %cst_37 = arith.constant dense<0.000000e+00> : vector<16xf32>
    %52 = vector.multi_reduction <add>, %51, %cst_37 [1] : vector<16x64xf32> to vector<16xf32>
    %53 = vector.shape_cast %52 : vector<16xf32> to vector<16x1xf32>
    %cst_38 = arith.constant 6.400000e+01 : f32
    %54 = vector.broadcast %cst_38 : f32 to vector<16x1xf32>
    %55 = arith.divf %53, %54 : vector<16x1xf32>
    %cst_39 = arith.constant 9.99999974E-6 : f32
    %56 = vector.broadcast %cst_39 : f32 to vector<16x1xf32>
    %57 = arith.addf %55, %56 : vector<16x1xf32>
    %58 = math.rsqrt %57 : vector<16x1xf32>
    %59 = vector.broadcast %58 : vector<16x1xf32> to vector<16x64xf32>
    %60 = arith.mulf %50, %59 : vector<16x64xf32>
    %c0_40 = arith.constant 0 : index
    %c0_41 = arith.constant 0 : index
    %61 = vector.load %arg14[%c0_40, %c0_41] : memref<1x64xf32, #tpu.memory_space<vmem>>, vector<1x64xf32>
    %62 = vector.broadcast %61 : vector<1x64xf32> to vector<16x64xf32>
    %63 = arith.mulf %60, %62 : vector<16x64xf32>
    %c0_42 = arith.constant 0 : index
    %c0_43 = arith.constant 0 : index
    %64 = vector.load %arg15[%c0_42, %c0_43] : memref<1x64xf32, #tpu.memory_space<vmem>>, vector<1x64xf32>
    %65 = vector.broadcast %64 : vector<1x64xf32> to vector<16x64xf32>
    %66 = arith.addf %63, %65 : vector<16x64xf32>
    %c0_44 = arith.constant 0 : index
    %c0_45 = arith.constant 0 : index
    %67 = vector.load %arg16[%c0_44, %c0_45] : memref<16x64xf32, #tpu.memory_space<vmem>>, vector<16x64xf32>
    tpu.vector_store %arg16[%c0_44, %c0_45], %66 {strides = array<i32>} : memref<16x64xf32, #tpu.memory_space<vmem>>, vector<16x64xf32>,
    return
  }
  func.func @transform_0(%arg0: i32) -> (i32, i32) {
    %c0_i32 = arith.constant 0 : i32
    %c0_i32_0 = arith.constant 0 : i32
    return %arg0, %c0_i32 : i32, i32
  }
  func.func @transform_1(%arg0: i32) -> (i32, i32) {
    %c0_i32 = arith.constant 0 : i32
    %c0_i32_0 = arith.constant 0 : i32
    return %arg0, %c0_i32 : i32, i32
  }
  func.func @transform_2(%arg0: i32) -> (i32, i32) {
    %c0_i32 = arith.constant 0 : i32
    %c0_i32_0 = arith.constant 0 : i32
    %c0_i32_1 = arith.constant 0 : i32
    return %c0_i32, %c0_i32_0 : i32, i32
  }
  func.func @transform_3(%arg0: i32) -> (i32, i32) {
    %c0_i32 = arith.constant 0 : i32
    %c0_i32_0 = arith.constant 0 : i32
    %c0_i32_1 = arith.constant 0 : i32
    return %c0_i32, %c0_i32_0 : i32, i32
  }
  func.func @transform_4(%arg0: i32) -> (i32, i32) {
    %c0_i32 = arith.constant 0 : i32
    %c0_i32_0 = arith.constant 0 : i32
    %c0_i32_1 = arith.constant 0 : i32
    return %c0_i32, %c0_i32_0 : i32, i32
  }
  func.func @transform_5(%arg0: i32) -> (i32, i32) {
    %c0_i32 = arith.constant 0 : i32
    %c0_i32_0 = arith.constant 0 : i32
    %c0_i32_1 = arith.constant 0 : i32
    return %c0_i32, %c0_i32_0 : i32, i32
  }
  func.func @transform_6(%arg0: i32) -> (i32, i32) {
    %c0_i32 = arith.constant 0 : i32
    %c0_i32_0 = arith.constant 0 : i32
    %c0_i32_1 = arith.constant 0 : i32
    return %c0_i32, %c0_i32_0 : i32, i32
  }
  func.func @transform_7(%arg0: i32) -> (i32, i32) {
    %c0_i32 = arith.constant 0 : i32
    %c0_i32_0 = arith.constant 0 : i32
    %c0_i32_1 = arith.constant 0 : i32
    return %c0_i32, %c0_i32_0 : i32, i32
  }
  func.func @transform_8(%arg0: i32) -> (i32, i32) {
    %c0_i32 = arith.constant 0 : i32
    %c0_i32_0 = arith.constant 0 : i32
    %c0_i32_1 = arith.constant 0 : i32
    return %c0_i32, %c0_i32_0 : i32, i32
  }
  func.func @transform_9(%arg0: i32) -> (i32, i32) {
    %c0_i32 = arith.constant 0 : i32
    %c0_i32_0 = arith.constant 0 : i32
    %c0_i32_1 = arith.constant 0 : i32
    return %c0_i32, %c0_i32_0 : i32, i32
  }
  func.func @transform_10(%arg0: i32) -> (i32, i32) {
    %c0_i32 = arith.constant 0 : i32
    %c0_i32_0 = arith.constant 0 : i32
    %c0_i32_1 = arith.constant 0 : i32
    return %c0_i32, %c0_i32_0 : i32, i32
  }
  func.func @transform_11(%arg0: i32) -> (i32, i32) {
    %c0_i32 = arith.constant 0 : i32
    %c0_i32_0 = arith.constant 0 : i32
    %c0_i32_1 = arith.constant 0 : i32
    return %c0_i32, %c0_i32_0 : i32, i32
  }
  func.func @transform_12(%arg0: i32) -> (i32, i32) {
    %c0_i32 = arith.constant 0 : i32
    %c0_i32_0 = arith.constant 0 : i32
    %c0_i32_1 = arith.constant 0 : i32
    return %c0_i32, %c0_i32_0 : i32, i32
  }
  func.func @transform_13(%arg0: i32) -> (i32, i32) {
    %c0_i32 = arith.constant 0 : i32
    %c0_i32_0 = arith.constant 0 : i32
    %c0_i32_1 = arith.constant 0 : i32
    return %c0_i32, %c0_i32_0 : i32, i32
  }
  func.func @transform_14(%arg0: i32) -> (i32, i32) {
    %c0_i32 = arith.constant 0 : i32
    %c0_i32_0 = arith.constant 0 : i32
    %c0_i32_1 = arith.constant 0 : i32
    return %c0_i32, %c0_i32_0 : i32, i32
  }
  func.func @transform_15(%arg0: i32) -> (i32, i32) {
    %c0_i32 = arith.constant 0 : i32
    %c0_i32_0 = arith.constant 0 : i32
    return %arg0, %c0_i32 : i32, i32
  }
}

</mosaic_0001>

<llo_original>
// kernel: _grn_pallas.1
$region0: #{_grn_pallas.1}
  #allocation0 [shape = 'u32[]', space=smem, size = 0x4, offset = 0x4, fixed_abs, tag = 'smem constant byte address 0x4 - core index']
  #allocation1 [shape = 'u32[144,128]{1,0:T(1,128)}', space=vmem, size = 0x12000, scoped, tag = 'internal scratch']
  %s0 = inlined_call_operand.hbm [shape: f32[16,32], index: 0, kind: input, shape index: {}]
  %s1 = inlined_call_operand.hbm [shape: f32[16,16], index: 1, kind: input, shape index: {}]
  %s2 = inlined_call_operand.hbm [shape: f32[32,64], index: 2, kind: input, shape index: {}]
  %s3 = inlined_call_operand.vmem [shape: f32[1,64], index: 3, kind: input, shape index: {}]
  %s4 = inlined_call_operand.hbm [shape: f32[32,32], index: 4, kind: input, shape index: {}]
  %s5 = inlined_call_operand.vmem [shape: f32[1,32], index: 5, kind: input, shape index: {}]
  %s6 = inlined_call_operand.hbm [shape: f32[16,32], index: 6, kind: input, shape index: {}]
  %s7 = inlined_call_operand.hbm [shape: f32[32,64], index: 7, kind: input, shape index: {}]
  %s8 = inlined_call_operand.vmem [shape: f32[1,64], index: 8, kind: input, shape index: {}]
  %s9 = inlined_call_operand.hbm [shape: f32[64,64], index: 9, kind: input, shape index: {}]
  %s10 = inlined_call_operand.vmem [shape: f32[1,64], index: 10, kind: input, shape index: {}]
  %s11 = inlined_call_operand.hbm [shape: f32[64,64], index: 11, kind: input, shape index: {}]
  %s12 = inlined_call_operand.vmem [shape: f32[1,64], index: 12, kind: input, shape index: {}]
  %s13 = inlined_call_operand.vmem [shape: f32[1,64], index: 13, kind: input, shape index: {}]
  %s14 = inlined_call_operand.vmem [shape: f32[1,64], index: 14, kind: input, shape index: {}]
  %s15 = inlined_call_operand.hbm [shape: f32[16,64], index: 15, kind: output, shape index: {}]
  %s16 = sld [smem:[#allocation0]]
  $region102: #{_grn_pallas.1} parent=0
    _
  %s18 = ssub.s32 1, %s16
  %s19 = scalar_select 0, %s18, %s16
  $region1: #{_grn_pallas.1} parent=0
    #allocation2 [shape = 'u8[8192]{0}', space=vmem, size = 0x2000, scoped, tag = 'input window, operand 0, single buffered']
    #allocation3 [shape = 's32[1]{0}', space=sflag, size = 0x4, scoped, tag = 'scoped memory for _grn_pallas.1']
    #allocation4 [shape = 's32[1]{0}', space=sflag, size = 0x4, scoped, tag = 'scoped memory for _grn_pallas.1']
    #allocation5 [shape = 'u8[8192]{0}', space=vmem, size = 0x2000, scoped, tag = 'input window, operand 1, single buffered']
    #allocation6 [shape = 's32[1]{0}', space=sflag, size = 0x4, scoped, tag = 'scoped memory for _grn_pallas.1']
    #allocation7 [shape = 'u8[16384]{0}', space=vmem, size = 0x4000, scoped, tag = 'input window, operand 2, single buffered']
    #allocation8 [shape = 'u8[16384]{0}', space=vmem, size = 0x4000, scoped, tag = 'input window, operand 4, single buffered']
    #allocation9 [shape = 's32[1]{0}', space=sflag, size = 0x4, scoped, tag = 'scoped memory for _grn_pallas.1']
    #allocation10 [shape = 'u8[8192]{0}', space=vmem, size = 0x2000, scoped, tag = 'input window, operand 6, single buffered']
    #allocation11 [shape = 'u8[16384]{0}', space=vmem, size = 0x4000, scoped, tag = 'input window, operand 7, single buffered']
    #allocation12 [shape = 's32[1]{0}', space=sflag, size = 0x4, scoped, tag = 'scoped memory for _grn_pallas.1']
    #allocation13 [shape = 'u8[32768]{0}', space=vmem, size = 0x8000, scoped, tag = 'input window, operand 9, single buffered']
    #allocation14 [shape = 'u8[32768]{0}', space=vmem, size = 0x8000, scoped, tag = 'input window, operand 11, single buffered']
    #allocation15 [shape = 's32[1]{0}', space=sflag, size = 0x4, scoped, tag = 'scoped memory for _grn_pallas.1']
    #allocation16 [shape = 'u8[8192]{0}', space=vmem, size = 0x2000, scoped, tag = 'output window, operand 0, single buffered']
    %20 = vsyncpa [#allocation3], 0
    %21 = vsyncpa [#allocation6], 0
    %22 = vsyncpa [#allocation9], 0
    %23 = vsyncpa [#allocation12], 0
    %24 = vsyncpa [#allocation15], 0
    %25 = vsyncpa [#allocation4], 0
    // Predicated region
    $region2: #{_grn_pallas.1} parent=1 // pred_check
      _
    $region3: #{_grn_pallas.1} parent=1 // pred_check_branch
      %27 = sbr.rel (0) target = $region5
    $region4: #{_grn_pallas.1} parent=1 // pred_region
      %s29 = ssub.s32 256, 256
      %30 = vsyncadd [#allocation3], %s29
      %s31 = sshll.u32 [#allocation2], 4
      %s32 = int_to_ptr.vmem [resolvable:$true] %s31
      %37 = dma.hbm_to_vmem [thread:$0]  %s0, 256, %s32, [#allocation3], 128, 128, 8
    $region5: #{_grn_pallas.1} parent=1 // pred_fallthru
      _
    // Predicated region
    $region6: #{_grn_pallas.1} parent=1 // pred_check
      _
    $region7: #{_grn_pallas.1} parent=1 // pred_check_branch
      %39 = sbr.rel (0) target = $region9
    $region8: #{_grn_pallas.1} parent=1 // pred_region
      %s41 = ssub.s32 256, 256
      %42 = vsyncadd [#allocation6], %s41
      %s43 = sshll.u32 [#allocation5], 4
      %s44 = int_to_ptr.vmem [resolvable:$true] %s43
      %49 = dma.hbm_to_vmem [thread:$0]  %s1, 256, %s44, [#allocation6], 128, 128, 8
    $region9: #{_grn_pallas.1} parent=1 // pred_fallthru
      _
    // Predicated region
    $region10: #{_grn_pallas.1} parent=1 // pred_check
      _
    $region11: #{_grn_pallas.1} parent=1 // pred_check_branch
      %51 = sbr.rel (0) target = $region13
    $region12: #{_grn_pallas.1} parent=1 // pred_region
      %s53 = ssub.s32 512, 512
      %54 = vsyncadd [#allocation6], %s53
      %s55 = sshll.u32 [#allocation7], 4
      %s56 = int_to_ptr.vmem [resolvable:$true] %s55
      %61 = dma.hbm_to_vmem [thread:$0]  %s2, 512, %s56, [#allocation6], 128, 128, 8
    $region13: #{_grn_pallas.1} parent=1 // pred_fallthru
      _
    // Predicated region
    $region14: #{_grn_pallas.1} parent=1 // pred_check
      _
    $region15: #{_grn_pallas.1} parent=1 // pred_check_branch
      %63 = sbr.rel (0) target = $region17
    $region16: #{_grn_pallas.1} parent=1 // pred_region
      _
    $region17: #{_grn_pallas.1} parent=1 // pred_fallthru
      _
    // Predicated region
    $region18: #{_grn_pallas.1} parent=1 // pred_check
      _
    $region19: #{_grn_pallas.1} parent=1 // pred_check_branch
      %65 = sbr.rel (0) target = $region21
    $region20: #{_grn_pallas.1} parent=1 // pred_region
      %s67 = ssub.s32 512, 512
      %68 = vsyncadd [#allocation9], %s67
      %s69 = sshll.u32 [#allocation8], 4
      %s70 = int_to_ptr.vmem [resolvable:$true] %s69
      %75 = dma.hbm_to_vmem [thread:$0]  %s4, 512, %s70, [#allocation9], 128, 128, 8
    $region21: #{_grn_pallas.1} parent=1 // pred_fallthru
      _
    // Predicated region
    $region22: #{_grn_pallas.1} parent=1 // pred_check
      _
    $region23: #{_grn_pallas.1} parent=1 // pred_check_branch
      %77 = sbr.rel (0) target = $region25
    $region24: #{_grn_pallas.1} parent=1 // pred_region
      _
    $region25: #{_grn_pallas.1} parent=1 // pred_fallthru
      _
    // Predicated region
    $region26: #{_grn_pallas.1} parent=1 // pred_check
      _
    $region27: #{_grn_pallas.1} parent=1 // pred_check_branch
      %79 = sbr.rel (0) target = $region29
    $region28: #{_grn_pallas.1} parent=1 // pred_region
      %s81 = ssub.s32 256, 256
      %82 = vsyncadd [#allocation9], %s81
      %s83 = sshll.u32 [#allocation10], 4
      %s84 = int_to_ptr.vmem [resolvable:$true] %s83
      %89 = dma.hbm_to_vmem [thread:$0]  %s6, 256, %s84, [#allocation9], 128, 128, 8
    $region29: #{_grn_pallas.1} parent=1 // pred_fallthru
      _
    // Predicated region
    $region30: #{_grn_pallas.1} parent=1 // pred_check
      _
    $region31: #{_grn_pallas.1} parent=1 // pred_check_branch
      %91 = sbr.rel (0) target = $region33
    $region32: #{_grn_pallas.1} parent=1 // pred_region
      %s93 = ssub.s32 512, 512
      %94 = vsyncadd [#allocation12], %s93
      %s95 = sshll.u32 [#allocation11], 4
      %s96 = int_to_ptr.vmem [resolvable:$true] %s95
      %101 = dma.hbm_to_vmem [thread:$0]  %s7, 512, %s96, [#allocation12], 128, 128, 8
    $region33: #{_grn_pallas.1} parent=1 // pred_fallthru
      _
    // Predicated region
    $region34: #{_grn_pallas.1} parent=1 // pred_check
      _
    $region35: #{_grn_pallas.1} parent=1 // pred_check_branch
      %103 = sbr.rel (0) target = $region37
    $region36: #{_grn_pallas.1} parent=1 // pred_region
      _
    $region37: #{_grn_pallas.1} parent=1 // pred_fallthru
      _
    // Predicated region
    $region38: #{_grn_pallas.1} parent=1 // pred_check
      _
    $region39: #{_grn_pallas.1} parent=1 // pred_check_branch
      %105 = sbr.rel (0) target = $region41
    $region40: #{_grn_pallas.1} parent=1 // pred_region
      %s107 = ssub.s32 1024, 1024
      %108 = vsyncadd [#allocation12], %s107
      %s109 = sshll.u32 [#allocation13], 4
      %s110 = int_to_ptr.vmem [resolvable:$true] %s109
      %115 = dma.hbm_to_vmem [thread:$0]  %s9, 1024, %s110, [#allocation12], 128, 128, 8
    $region41: #{_grn_pallas.1} parent=1 // pred_fallthru
      _
    // Predicated region
    $region42: #{_grn_pallas.1} parent=1 // pred_check
      _
    $region43: #{_grn_pallas.1} parent=1 // pred_check_branch
      %117 = sbr.rel (0) target = $region45
    $region44: #{_grn_pallas.1} parent=1 // pred_region
      _
    $region45: #{_grn_pallas.1} parent=1 // pred_fallthru
      _
    // Predicated region
    $region46: #{_grn_pallas.1} parent=1 // pred_check
      _
    $region47: #{_grn_pallas.1} parent=1 // pred_check_branch
      %119 = sbr.rel (0) target = $region49
    $region48: #{_grn_pallas.1} parent=1 // pred_region
      %s121 = ssub.s32 1024, 1024
      %122 = vsyncadd [#allocation15], %s121
      %s123 = sshll.u32 [#allocation14], 4
      %s124 = int_to_ptr.vmem [resolvable:$true] %s123
      %129 = dma.hbm_to_vmem [thread:$0]  %s11, 1024, %s124, [#allocation15], 128, 128, 8
    $region49: #{_grn_pallas.1} parent=1 // pred_fallthru
      _
    // Predicated region
    $region50: #{_grn_pallas.1} parent=1 // pred_check
      _
    $region51: #{_grn_pallas.1} parent=1 // pred_check_branch
      %131 = sbr.rel (0) target = $region53
    $region52: #{_grn_pallas.1} parent=1 // pred_region
      _
    $region53: #{_grn_pallas.1} parent=1 // pred_fallthru
      _
    // Predicated region
    $region54: #{_grn_pallas.1} parent=1 // pred_check
      _
    $region55: #{_grn_pallas.1} parent=1 // pred_check_branch
      %133 = sbr.rel (0) target = $region57
    $region56: #{_grn_pallas.1} parent=1 // pred_region
      _
    $region57: #{_grn_pallas.1} parent=1 // pred_fallthru
      _
    // Predicated region
    $region58: #{_grn_pallas.1} parent=1 // pred_check
      _
    $region59: #{_grn_pallas.1} parent=1 // pred_check_branch
      %135 = sbr.rel (0) target = $region61
    $region60: #{_grn_pallas.1} parent=1 // pred_region
      _
    $region61: #{_grn_pallas.1} parent=1 // pred_fallthru
      _
    // Predicated region
    $region62: #{_grn_pallas.1} parent=1 // pred_check
      _
    $region63: #{_grn_pallas.1} parent=1 // pred_check_branch
      %137 = sbr.rel (0) target = $region65
    $region64: #{_grn_pallas.1} parent=1 // pred_region
      %138 = dma.done [#allocation3], 256
    $region65: #{_grn_pallas.1} parent=1 // pred_fallthru
      _
    // Predicated region
    $region66: #{_grn_pallas.1} parent=1 // pred_check
      _
    $region67: #{_grn_pallas.1} parent=1 // pred_check_branch
      %140 = sbr.rel (0) target = $region69
    $region68: #{_grn_pallas.1} parent=1 // pred_region
      %141 = dma.done [#allocation6], 256
    $region69: #{_grn_pallas.1} parent=1 // pred_fallthru
      _
    // Predicated region
    $region70: #{_grn_pallas.1} parent=1 // pred_check
      _
    $region71: #{_grn_pallas.1} parent=1 // pred_check_branch
      %143 = sbr.rel (0) target = $region73
    $region72: #{_grn_pallas.1} parent=1 // pred_region
      %144 = dma.done [#allocation6], 512
    $region73: #{_grn_pallas.1} parent=1 // pred_fallthru
      _
    // Predicated region
    $region74: #{_grn_pallas.1} parent=1 // pred_check
      _
    $region75: #{_grn_pallas.1} parent=1 // pred_check_branch
      %146 = sbr.rel (0) target = $region77
    $region76: #{_grn_pallas.1} parent=1 // pred_region
      %147 = dma.done [#allocation9], 512
    $region77: #{_grn_pallas.1} parent=1 // pred_fallthru
      _
    // Predicated region
    $region78: #{_grn_pallas.1} parent=1 // pred_check
      _
    $region79: #{_grn_pallas.1} parent=1 // pred_check_branch
      %149 = sbr.rel (0) target = $region81
    $region80: #{_grn_pallas.1} parent=1 // pred_region
      %150 = dma.done [#allocation9], 256
    $region81: #{_grn_pallas.1} parent=1 // pred_fallthru
      _
    // Predicated region
    $region82: #{_grn_pallas.1} parent=1 // pred_check
      _
    $region83: #{_grn_pallas.1} parent=1 // pred_check_branch
      %152 = sbr.rel (0) target = $region85
    $region84: #{_grn_pallas.1} parent=1 // pred_region
      %153 = dma.done [#allocation12], 512
    $region85: #{_grn_pallas.1} parent=1 // pred_fallthru
      _
    // Predicated region
    $region86: #{_grn_pallas.1} parent=1 // pred_check
      _
    $region87: #{_grn_pallas.1} parent=1 // pred_check_branch
      %155 = sbr.rel (0) target = $region89
    $region88: #{_grn_pallas.1} parent=1 // pred_region
      %156 = dma.done [#allocation12], 1024
    $region89: #{_grn_pallas.1} parent=1 // pred_fallthru
      _
    // Predicated region
    $region90: #{_grn_pallas.1} parent=1 // pred_check
      _
    $region91: #{_grn_pallas.1} parent=1 // pred_check_branch
      %158 = sbr.rel (0) target = $region93
    $region92: #{_grn_pallas.1} parent=1 // pred_region
      %159 = dma.done [#allocation15], 1024
    $region93: #{_grn_pallas.1} parent=1 // pred_fallthru
      _
    %v160 = vld [vmem:[#allocation2] sm:$0xff]
    %v161 = vld [vmem:[#allocation2 + $0x8] sm:$0xff]
    %v162 = vld [vmem:[#allocation7] sm:$0xff]
    %v163 = vld [vmem:[#allocation7 + $0x8] sm:$0xff]
    %v164 = vld [vmem:[#allocation7 + $0x10] sm:$0xff]
    %v165 = vld [vmem:[#allocation7 + $0x18] sm:$0xff]
    %v166 = vld [vmem:[%s3] sm:$0x1]
    %v168 = vlaneseq
    %v169 = vshrl.u32 %v168, 7
    %v170 = vsub.s32 0, %v169
    %v171 = vrot.slane %v166, %v170
    %vm173 = vcmask 261120
    %v175 = vsel %vm173, %v160, 0
    %v178 = vsel %vm173, %v161, 0
    %180 = vmatprep.subr.mxu0 0.0
    %181 = vmatpush1.msra.mxu0 0.0
    %182 = vmatprep.subr.mxu0 0.0
    %183 = vmatpush1.msra.mxu0 0.0
    %184 = vmatprep.subr.mxu0 0.0
    %185 = vmatpush1.msra.mxu0 0.0
    %186 = vmatprep.subr.mxu0 0.0
    %187 = vmatpush1.msra.mxu0 0.0
    %188 = vmatprep.subr.mxu0 0.0
    %189 = vmatpush1.msra.mxu0 0.0
    %190 = vmatprep.subr.mxu0 0.0
    %191 = vmatpush1.msra.mxu0 0.0
    %192 = vmatprep.subr.mxu0 0.0
    %193 = vmatpush1.msra.mxu0 0.0
    %194 = vmatprep.subr.mxu0 0.0
    %195 = vmatpush1.msra.mxu0 0.0
    %196 = vmatprep.subr.mxu0 0.0
    %197 = vmatpush1.msra.mxu0 0.0
    %198 = vmatprep.subr.mxu0 0.0
    %199 = vmatpush1.msra.mxu0 0.0
    %200 = vmatprep.subr.mxu0 0.0
    %201 = vmatpush1.msra.mxu0 0.0
    %202 = vmatprep.subr.mxu0 0.0
    %203 = vmatpush1.msra.mxu0 0.0
    %204 = vmatprep.subr.mxu0 0.0
    %205 = vmatpush1.msra.mxu0 %v165
    %206 = vmatprep.subr.mxu0 0.0
    %207 = vmatpush1.msra.mxu0 %v164
    %208 = vmatprep.subr.mxu0 0.0
    %209 = vmatpush1.msra.mxu0 %v163
    %210 = vmatprep.subr.mxu0 0.0
    %211 = vmatpush1.msra.mxu0 %v162
    %212 = vmatprep.subr.mxu0 0.0
    %213 = vmatpush2.msra.mxu0 0.0
    %214 = vmatprep.subr.mxu0 0.0
    %215 = vmatpush2.msra.mxu0 0.0
    %216 = vmatprep.subr.mxu0 0.0
    %217 = vmatpush2.msra.mxu0 0.0
    %218 = vmatprep.subr.mxu0 0.0
    %219 = vmatpush2.msra.mxu0 0.0
    %220 = vmatprep.subr.mxu0 0.0
    %221 = vmatpush2.msra.mxu0 0.0
    %222 = vmatprep.subr.mxu0 0.0
    %223 = vmatpush2.msra.mxu0 0.0
    %224 = vmatprep.subr.mxu0 0.0
    %225 = vmatpush2.msra.mxu0 0.0
    %226 = vmatprep.subr.mxu0 0.0
    %227 = vmatpush2.msra.mxu0 0.0
    %228 = vmatprep.subr.mxu0 0.0
    %229 = vmatpush2.msra.mxu0 0.0
    %230 = vmatprep.subr.mxu0 0.0
    %231 = vmatpush2.msra.mxu0 0.0
    %232 = vmatprep.subr.mxu0 0.0
    %233 = vmatpush2.msra.mxu0 0.0
    %234 = vmatprep.subr.mxu0 0.0
    %235 = vmatpush2.msra.mxu0 0.0
    %236 = vmatprep.subr.mxu0 0.0
    %237 = vmatpush2.msra.mxu0 0.0
    %238 = vmatprep.subr.mxu0 0.0
    %239 = vmatpush2.msra.mxu0 0.0
    %240 = vmatprep.subr.mxu0 0.0
    %241 = vmatpush2.msra.mxu0 0.0
    %242 = vmatprep.subr.mxu0 0.0
    %243 = vmatpush2.msra.mxu0 0.0
    %244 = vmatprep.mubr.f32.mxu0 0.0
    %245 = vmatmul.mubr.f32.gmra.mxu0 %v175
    %v246 = vpop.f32.mrf.mxu0
    %v247 = vadd.f32 %v171, %v246
    %v248 = vpop.f32.mrf.mxu0
    %249 = vmatprep.mubr.f32.mxu0 0.0
    %250 = vmatmul.mubr.f32.gmra.mxu0 %v178
    %v251 = vpop.f32.mrf.mxu0
    %v252 = vadd.f32 %v171, %v251
    %v253 = vpop.f32.mrf.mxu0
    %254 = vdwg.mxu0
    %v255 = vld [vmem:[#allocation8] sm:$0xff]
    %v256 = vld [vmem:[#allocation8 + $0x8] sm:$0xff]
    %v257 = vld [vmem:[#allocation8 + $0x10] sm:$0xff]
    %v258 = vld [vmem:[#allocation8 + $0x18] sm:$0xff]
    %v259 = vld [vmem:[%s5] sm:$0x1]
    %v261 = vlaneseq
    %v262 = vshrl.u32 %v261, 7
    %v263 = vsub.s32 0, %v262
    %v264 = vrot.slane %v259, %v263
    %266 = vmatprep.subr.mxu0 0.0
    %267 = vmatpush1.msra.mxu0 0.0
    %268 = vmatprep.subr.mxu0 0.0
    %269 = vmatpush1.msra.mxu0 0.0
    %270 = vmatprep.subr.mxu0 0.0
    %271 = vmatpush1.msra.mxu0 0.0
    %272 = vmatprep.subr.mxu0 0.0
    %273 = vmatpush1.msra.mxu0 0.0
    %274 = vmatprep.subr.mxu0 0.0
    %275 = vmatpush1.msra.mxu0 0.0
    %276 = vmatprep.subr.mxu0 0.0
    %277 = vmatpush1.msra.mxu0 0.0
    %278 = vmatprep.subr.mxu0 0.0
    %279 = vmatpush1.msra.mxu0 0.0
    %280 = vmatprep.subr.mxu0 0.0
    %281 = vmatpush1.msra.mxu0 0.0
    %282 = vmatprep.subr.mxu0 0.0
    %283 = vmatpush1.msra.mxu0 0.0
    %284 = vmatprep.subr.mxu0 0.0
    %285 = vmatpush1.msra.mxu0 0.0
    %286 = vmatprep.subr.mxu0 0.0
    %287 = vmatpush1.msra.mxu0 0.0
    %288 = vmatprep.subr.mxu0 0.0
    %289 = vmatpush1.msra.mxu0 0.0
    %290 = vmatprep.subr.mxu0 0.0
    %291 = vmatpush1.msra.mxu0 %v258
    %292 = vmatprep.subr.mxu0 0.0
    %293 = vmatpush1.msra.mxu0 %v257
    %294 = vmatprep.subr.mxu0 0.0
    %295 = vmatpush1.msra.mxu0 %v256
    %296 = vmatprep.subr.mxu0 0.0
    %297 = vmatpush1.msra.mxu0 %v255
    %298 = vmatprep.subr.mxu0 0.0
    %299 = vmatpush2.msra.mxu0 0.0
    %300 = vmatprep.subr.mxu0 0.0
    %301 = vmatpush2.msra.mxu0 0.0
    %302 = vmatprep.subr.mxu0 0.0
    %303 = vmatpush2.msra.mxu0 0.0
    %304 = vmatprep.subr.mxu0 0.0
    %305 = vmatpush2.msra.mxu0 0.0
    %306 = vmatprep.subr.mxu0 0.0
    %307 = vmatpush2.msra.mxu0 0.0
    %308 = vmatprep.subr.mxu0 0.0
    %309 = vmatpush2.msra.mxu0 0.0
    %310 = vmatprep.subr.mxu0 0.0
    %311 = vmatpush2.msra.mxu0 0.0
    %312 = vmatprep.subr.mxu0 0.0
    %313 = vmatpush2.msra.mxu0 0.0
    %314 = vmatprep.subr.mxu0 0.0
    %315 = vmatpush2.msra.mxu0 0.0
    %316 = vmatprep.subr.mxu0 0.0
    %317 = vmatpush2.msra.mxu0 0.0
    %318 = vmatprep.subr.mxu0 0.0
    %319 = vmatpush2.msra.mxu0 0.0
    %320 = vmatprep.subr.mxu0 0.0
    %321 = vmatpush2.msra.mxu0 0.0
    %322 = vmatprep.subr.mxu0 0.0
    %323 = vmatpush2.msra.mxu0 0.0
    %324 = vmatprep.subr.mxu0 0.0
    %325 = vmatpush2.msra.mxu0 0.0
    %326 = vmatprep.subr.mxu0 0.0
    %327 = vmatpush2.msra.mxu0 0.0
    %328 = vmatprep.subr.mxu0 0.0
    %329 = vmatpush2.msra.mxu0 0.0
    %330 = vmatprep.mubr.f32.mxu0 0.0
    %331 = vmatmul.mubr.f32.gmra.mxu0 %v175
    %v332 = vpop.f32.mrf.mxu0
    %v333 = vadd.f32 %v264, %v332
    %v334 = vpop.f32.mrf.mxu0
    %335 = vmatprep.mubr.f32.mxu0 0.0
    %336 = vmatmul.mubr.f32.gmra.mxu0 %v178
    %v337 = vpop.f32.mrf.mxu0
    %v338 = vadd.f32 %v264, %v337
    %v339 = vpop.f32.mrf.mxu0
    %340 = vdwg.mxu0
    %v341 = vld [vmem:[#allocation5] sm:$0xff]
    %v342 = vld [vmem:[#allocation5 + $0x8] sm:$0xff]
    %v343 = vld [vmem:[#allocation10] sm:$0xff]
    %v344 = vld [vmem:[#allocation10 + $0x8] sm:$0xff]
    %vm345 = vcmask 130048
    %v347 = vsel %vm345, %v341, 0
    %v350 = vsel %vm345, %v342, 0
    %352 = vmatprep.subr.mxu0 0.0
    %353 = vmatpush1.msra.mxu0 0.0
    %354 = vmatprep.subr.mxu0 0.0
    %355 = vmatpush1.msra.mxu0 0.0
    %356 = vmatprep.subr.mxu0 0.0
    %357 = vmatpush1.msra.mxu0 0.0
    %358 = vmatprep.subr.mxu0 0.0
    %359 = vmatpush1.msra.mxu0 0.0
    %360 = vmatprep.subr.mxu0 0.0
    %361 = vmatpush1.msra.mxu0 0.0
    %362 = vmatprep.subr.mxu0 0.0
    %363 = vmatpush1.msra.mxu0 0.0
    %364 = vmatprep.subr.mxu0 0.0
    %365 = vmatpush1.msra.mxu0 0.0
    %366 = vmatprep.subr.mxu0 0.0
    %367 = vmatpush1.msra.mxu0 0.0
    %368 = vmatprep.subr.mxu0 0.0
    %369 = vmatpush1.msra.mxu0 0.0
    %370 = vmatprep.subr.mxu0 0.0
    %371 = vmatpush1.msra.mxu0 0.0
    %372 = vmatprep.subr.mxu0 0.0
    %373 = vmatpush1.msra.mxu0 0.0
    %374 = vmatprep.subr.mxu0 0.0
    %375 = vmatpush1.msra.mxu0 0.0
    %376 = vmatprep.subr.mxu0 0.0
    %377 = vmatpush1.msra.mxu0 0.0
    %378 = vmatprep.subr.mxu0 0.0
    %379 = vmatpush1.msra.mxu0 0.0
    %380 = vmatprep.subr.mxu0 0.0
    %381 = vmatpush1.msra.mxu0 %v344
    %382 = vmatprep.subr.mxu0 0.0
    %383 = vmatpush1.msra.mxu0 %v343
    %384 = vmatprep.subr.mxu0 0.0
    %385 = vmatpush2.msra.mxu0 0.0
    %386 = vmatprep.subr.mxu0 0.0
    %387 = vmatpush2.msra.mxu0 0.0
    %388 = vmatprep.subr.mxu0 0.0
    %389 = vmatpush2.msra.mxu0 0.0
    %390 = vmatprep.subr.mxu0 0.0
    %391 = vmatpush2.msra.mxu0 0.0
    %392 = vmatprep.subr.mxu0 0.0
    %393 = vmatpush2.msra.mxu0 0.0
    %394 = vmatprep.subr.mxu0 0.0
    %395 = vmatpush2.msra.mxu0 0.0
    %396 = vmatprep.subr.mxu0 0.0
    %397 = vmatpush2.msra.mxu0 0.0
    %398 = vmatprep.subr.mxu0 0.0
    %399 = vmatpush2.msra.mxu0 0.0
    %400 = vmatprep.subr.mxu0 0.0
    %401 = vmatpush2.msra.mxu0 0.0
    %402 = vmatprep.subr.mxu0 0.0
    %403 = vmatpush2.msra.mxu0 0.0
    %404 = vmatprep.subr.mxu0 0.0
    %405 = vmatpush2.msra.mxu0 0.0
    %406 = vmatprep.subr.mxu0 0.0
    %407 = vmatpush2.msra.mxu0 0.0
    %408 = vmatprep.subr.mxu0 0.0
    %409 = vmatpush2.msra.mxu0 0.0
    %410 = vmatprep.subr.mxu0 0.0
    %411 = vmatpush2.msra.mxu0 0.0
    %412 = vmatprep.subr.mxu0 0.0
    %413 = vmatpush2.msra.mxu0 0.0
    %414 = vmatprep.subr.mxu0 0.0
    %415 = vmatpush2.msra.mxu0 0.0
    %416 = vmatprep.mubr.f32.mxu0 0.0
    %417 = vmatmul.mubr.f32.gmra.mxu0 %v347
    %v418 = vpop.f32.mrf.mxu0
    %v419 = vadd.f32 0.0, %v418
    %v420 = vpop.f32.mrf.mxu0
    %421 = vmatprep.mubr.f32.mxu0 0.0
    %422 = vmatmul.mubr.f32.gmra.mxu0 %v350
    %v423 = vpop.f32.mrf.mxu0
    %v424 = vadd.f32 0.0, %v423
    %v425 = vpop.f32.mrf.mxu0
    %426 = vdwg.mxu0
    %v427 = vadd.f32 %v333, %v419
    %v428 = vadd.f32 %v338, %v424
    %vm429 = vcmp.gt.f32.partialorder %v427, 0.0
    %vm430 = vcmp.gt.f32.partialorder %v428, 0.0
    %v431 = vmul.f32 %v427, 1.442695
    %v432 = vpow.pop %v431
    %v433 = vmul.f32 %v428, 1.442695
    %v434 = vpow.pop %v433
    %v435 = vsub.f32 %v432, 1.0
    %v436 = vsub.f32 %v434, 1.0
    %v437 = vsel %vm429, %v427, %v435
    %v438 = vsel %vm430, %v428, %v436
    %v439 = vld [vmem:[#allocation11] sm:$0xff]
    %v440 = vld [vmem:[#allocation11 + $0x8] sm:$0xff]
    %v441 = vld [vmem:[#allocation11 + $0x10] sm:$0xff]
    %v442 = vld [vmem:[#allocation11 + $0x18] sm:$0xff]
    %v443 = vld [vmem:[%s8] sm:$0x1]
    %v445 = vlaneseq
    %v446 = vshrl.u32 %v445, 7
    %v447 = vsub.s32 0, %v446
    %v448 = vrot.slane %v443, %v447
    %v451 = vsel %vm173, %v437, 0
    %v454 = vsel %vm173, %v438, 0
    %456 = vmatprep.subr.mxu0 0.0
    %457 = vmatpush1.msra.mxu0 0.0
    %458 = vmatprep.subr.mxu0 0.0
    %459 = vmatpush1.msra.mxu0 0.0
    %460 = vmatprep.subr.mxu0 0.0
    %461 = vmatpush1.msra.mxu0 0.0
    %462 = vmatprep.subr.mxu0 0.0
    %463 = vmatpush1.msra.mxu0 0.0
    %464 = vmatprep.subr.mxu0 0.0
    %465 = vmatpush1.msra.mxu0 0.0
    %466 = vmatprep.subr.mxu0 0.0
    %467 = vmatpush1.msra.mxu0 0.0
    %468 = vmatprep.subr.mxu0 0.0
    %469 = vmatpush1.msra.mxu0 0.0
    %470 = vmatprep.subr.mxu0 0.0
    %471 = vmatpush1.msra.mxu0 0.0
    %472 = vmatprep.subr.mxu0 0.0
    %473 = vmatpush1.msra.mxu0 0.0
    %474 = vmatprep.subr.mxu0 0.0
    %475 = vmatpush1.msra.mxu0 0.0
    %476 = vmatprep.subr.mxu0 0.0
    %477 = vmatpush1.msra.mxu0 0.0
    %478 = vmatprep.subr.mxu0 0.0
    %479 = vmatpush1.msra.mxu0 0.0
    %480 = vmatprep.subr.mxu0 0.0
    %481 = vmatpush1.msra.mxu0 %v442
    %482 = vmatprep.subr.mxu0 0.0
    %483 = vmatpush1.msra.mxu0 %v441
    %484 = vmatprep.subr.mxu0 0.0
    %485 = vmatpush1.msra.mxu0 %v440
    %486 = vmatprep.subr.mxu0 0.0
    %487 = vmatpush1.msra.mxu0 %v439
    %488 = vmatprep.subr.mxu0 0.0
    %489 = vmatpush2.msra.mxu0 0.0
    %490 = vmatprep.subr.mxu0 0.0
    %491 = vmatpush2.msra.mxu0 0.0
    %492 = vmatprep.subr.mxu0 0.0
    %493 = vmatpush2.msra.mxu0 0.0
    %494 = vmatprep.subr.mxu0 0.0
    %495 = vmatpush2.msra.mxu0 0.0
    %496 = vmatprep.subr.mxu0 0.0
    %497 = vmatpush2.msra.mxu0 0.0
    %498 = vmatprep.subr.mxu0 0.0
    %499 = vmatpush2.msra.mxu0 0.0
    %500 = vmatprep.subr.mxu0 0.0
    %501 = vmatpush2.msra.mxu0 0.0
    %502 = vmatprep.subr.mxu0 0.0
    %503 = vmatpush2.msra.mxu0 0.0
    %504 = vmatprep.subr.mxu0 0.0
    %505 = vmatpush2.msra.mxu0 0.0
    %506 = vmatprep.subr.mxu0 0.0
    %507 = vmatpush2.msra.mxu0 0.0
    %508 = vmatprep.subr.mxu0 0.0
    %509 = vmatpush2.msra.mxu0 0.0
    %510 = vmatprep.subr.mxu0 0.0
    %511 = vmatpush2.msra.mxu0 0.0
    %512 = vmatprep.subr.mxu0 0.0
    %513 = vmatpush2.msra.mxu0 0.0
    %514 = vmatprep.subr.mxu0 0.0
    %515 = vmatpush2.msra.mxu0 0.0
    %516 = vmatprep.subr.mxu0 0.0
    %517 = vmatpush2.msra.mxu0 0.0
    %518 = vmatprep.subr.mxu0 0.0
    %519 = vmatpush2.msra.mxu0 0.0
    %520 = vmatprep.mubr.f32.mxu0 0.0
    %521 = vmatmul.mubr.f32.gmra.mxu0 %v451
    %v522 = vpop.f32.mrf.mxu0
    %v523 = vadd.f32 %v448, %v522
    %v524 = vpop.f32.mrf.mxu0
    %525 = vmatprep.mubr.f32.mxu0 0.0
    %526 = vmatmul.mubr.f32.gmra.mxu0 %v454
    %v527 = vpop.f32.mrf.mxu0
    %v528 = vadd.f32 %v448, %v527
    %v529 = vpop.f32.mrf.mxu0
    %530 = vdwg.mxu0
    %v531 = vld [vmem:[#allocation13] sm:$0xff]
    %v532 = vld [vmem:[#allocation13 + $0x8] sm:$0xff]
    %v533 = vld [vmem:[#allocation13 + $0x10] sm:$0xff]
    %v534 = vld [vmem:[#allocation13 + $0x18] sm:$0xff]
    %v535 = vld [vmem:[#allocation13 + $0x20] sm:$0xff]
    %v536 = vld [vmem:[#allocation13 + $0x28] sm:$0xff]
    %v537 = vld [vmem:[#allocation13 + $0x30] sm:$0xff]
    %v538 = vld [vmem:[#allocation13 + $0x38] sm:$0xff]
    %v539 = vld [vmem:[%s10] sm:$0x1]
    %v541 = vlaneseq
    %v542 = vshrl.u32 %v541, 7
    %v543 = vsub.s32 0, %v542
    %v544 = vrot.slane %v539, %v543
    %vm546 = vcmask 523264
    %v548 = vsel %vm546, %v523, 0
    %v551 = vsel %vm546, %v528, 0
    %553 = vmatprep.subr.mxu0 0.0
    %554 = vmatpush1.msra.mxu0 0.0
    %555 = vmatprep.subr.mxu0 0.0
    %556 = vmatpush1.msra.mxu0 0.0
    %557 = vmatprep.subr.mxu0 0.0
    %558 = vmatpush1.msra.mxu0 0.0
    %559 = vmatprep.subr.mxu0 0.0
    %560 = vmatpush1.msra.mxu0 0.0
    %561 = vmatprep.subr.mxu0 0.0
    %562 = vmatpush1.msra.mxu0 0.0
    %563 = vmatprep.subr.mxu0 0.0
    %564 = vmatpush1.msra.mxu0 0.0
    %565 = vmatprep.subr.mxu0 0.0
    %566 = vmatpush1.msra.mxu0 0.0
    %567 = vmatprep.subr.mxu0 0.0
    %568 = vmatpush1.msra.mxu0 0.0
    %569 = vmatprep.subr.mxu0 0.0
    %570 = vmatpush1.msra.mxu0 %v538
    %571 = vmatprep.subr.mxu0 0.0
    %572 = vmatpush1.msra.mxu0 %v537
    %573 = vmatprep.subr.mxu0 0.0
    %574 = vmatpush1.msra.mxu0 %v536
    %575 = vmatprep.subr.mxu0 0.0
    %576 = vmatpush1.msra.mxu0 %v535
    %577 = vmatprep.subr.mxu0 0.0
    %578 = vmatpush1.msra.mxu0 %v534
    %579 = vmatprep.subr.mxu0 0.0
    %580 = vmatpush1.msra.mxu0 %v533
    %581 = vmatprep.subr.mxu0 0.0
    %582 = vmatpush1.msra.mxu0 %v532
    %583 = vmatprep.subr.mxu0 0.0
    %584 = vmatpush1.msra.mxu0 %v531
    %585 = vmatprep.subr.mxu0 0.0
    %586 = vmatpush2.msra.mxu0 0.0
    %587 = vmatprep.subr.mxu0 0.0
    %588 = vmatpush2.msra.mxu0 0.0
    %589 = vmatprep.subr.mxu0 0.0
    %590 = vmatpush2.msra.mxu0 0.0
    %591 = vmatprep.subr.mxu0 0.0
    %592 = vmatpush2.msra.mxu0 0.0
    %593 = vmatprep.subr.mxu0 0.0
    %594 = vmatpush2.msra.mxu0 0.0
    %595 = vmatprep.subr.mxu0 0.0
    %596 = vmatpush2.msra.mxu0 0.0
    %597 = vmatprep.subr.mxu0 0.0
    %598 = vmatpush2.msra.mxu0 0.0
    %599 = vmatprep.subr.mxu0 0.0
    %600 = vmatpush2.msra.mxu0 0.0
    %601 = vmatprep.subr.mxu0 0.0
    %602 = vmatpush2.msra.mxu0 0.0
    %603 = vmatprep.subr.mxu0 0.0
    %604 = vmatpush2.msra.mxu0 0.0
    %605 = vmatprep.subr.mxu0 0.0
    %606 = vmatpush2.msra.mxu0 0.0
    %607 = vmatprep.subr.mxu0 0.0
    %608 = vmatpush2.msra.mxu0 0.0
    %609 = vmatprep.subr.mxu0 0.0
    %610 = vmatpush2.msra.mxu0 0.0
    %611 = vmatprep.subr.mxu0 0.0
    %612 = vmatpush2.msra.mxu0 0.0
    %613 = vmatprep.subr.mxu0 0.0
    %614 = vmatpush2.msra.mxu0 0.0
    %615 = vmatprep.subr.mxu0 0.0
    %616 = vmatpush2.msra.mxu0 0.0
    %617 = vmatprep.mubr.f32.mxu0 0.0
    %618 = vmatmul.mubr.f32.gmra.mxu0 %v548
    %v619 = vpop.f32.mrf.mxu0
    %v620 = vadd.f32 %v544, %v619
    %v621 = vpop.f32.mrf.mxu0
    %622 = vmatprep.mubr.f32.mxu0 0.0
    %623 = vmatmul.mubr.f32.gmra.mxu0 %v551
    %v624 = vpop.f32.mrf.mxu0
    %v625 = vadd.f32 %v544, %v624
    %v626 = vpop.f32.mrf.mxu0
    %627 = vdwg.mxu0
    %v628 = vsub.f32 0.0, %v620
    %v629 = vsub.f32 0.0, %v625
    %v630 = vmul.f32 %v628, 1.442695
    %v631 = vpow.pop %v630
    %v632 = vmul.f32 %v629, 1.442695
    %v633 = vpow.pop %v632
    %v634 = vadd.f32 %v631, 1.0
    %v635 = vadd.f32 %v633, 1.0
    %v636 = vrcp.pop %v634
    %v637 = vmul.f32 1.0, %v636
    %v638 = vrcp.pop %v635
    %v639 = vmul.f32 1.0, %v638
    %v640 = vld [vmem:[#allocation14] sm:$0xff]
    %v641 = vld [vmem:[#allocation14 + $0x8] sm:$0xff]
    %v642 = vld [vmem:[#allocation14 + $0x10] sm:$0xff]
    %v643 = vld [vmem:[#allocation14 + $0x18] sm:$0xff]
    %v644 = vld [vmem:[#allocation14 + $0x20] sm:$0xff]
    %v645 = vld [vmem:[#allocation14 + $0x28] sm:$0xff]
    %v646 = vld [vmem:[#allocation14 + $0x30] sm:$0xff]
    %v647 = vld [vmem:[#allocation14 + $0x38] sm:$0xff]
    %v648 = vld [vmem:[%s12] sm:$0x1]
    %v650 = vlaneseq
    %v651 = vshrl.u32 %v650, 7
    %v652 = vsub.s32 0, %v651
    %v653 = vrot.slane %v648, %v652
    %655 = vmatprep.subr.mxu0 0.0
    %656 = vmatpush1.msra.mxu0 0.0
    %657 = vmatprep.subr.mxu0 0.0
    %658 = vmatpush1.msra.mxu0 0.0
    %659 = vmatprep.subr.mxu0 0.0
    %660 = vmatpush1.msra.mxu0 0.0
    %661 = vmatprep.subr.mxu0 0.0
    %662 = vmatpush1.msra.mxu0 0.0
    %663 = vmatprep.subr.mxu0 0.0
    %664 = vmatpush1.msra.mxu0 0.0
    %665 = vmatprep.subr.mxu0 0.0
    %666 = vmatpush1.msra.mxu0 0.0
    %667 = vmatprep.subr.mxu0 0.0
    %668 = vmatpush1.msra.mxu0 0.0
    %669 = vmatprep.subr.mxu0 0.0
    %670 = vmatpush1.msra.mxu0 0.0
    %671 = vmatprep.subr.mxu0 0.0
    %672 = vmatpush1.msra.mxu0 %v647
    %673 = vmatprep.subr.mxu0 0.0
    %674 = vmatpush1.msra.mxu0 %v646
    %675 = vmatprep.subr.mxu0 0.0
    %676 = vmatpush1.msra.mxu0 %v645
    %677 = vmatprep.subr.mxu0 0.0
    %678 = vmatpush1.msra.mxu0 %v644
    %679 = vmatprep.subr.mxu0 0.0
    %680 = vmatpush1.msra.mxu0 %v643
    %681 = vmatprep.subr.mxu0 0.0
    %682 = vmatpush1.msra.mxu0 %v642
    %683 = vmatprep.subr.mxu0 0.0
    %684 = vmatpush1.msra.mxu0 %v641
    %685 = vmatprep.subr.mxu0 0.0
    %686 = vmatpush1.msra.mxu0 %v640
    %687 = vmatprep.subr.mxu0 0.0
    %688 = vmatpush2.msra.mxu0 0.0
    %689 = vmatprep.subr.mxu0 0.0
    %690 = vmatpush2.msra.mxu0 0.0
    %691 = vmatprep.subr.mxu0 0.0
    %692 = vmatpush2.msra.mxu0 0.0
    %693 = vmatprep.subr.mxu0 0.0
    %694 = vmatpush2.msra.mxu0 0.0
    %695 = vmatprep.subr.mxu0 0.0
    %696 = vmatpush2.msra.mxu0 0.0
    %697 = vmatprep.subr.mxu0 0.0
    %698 = vmatpush2.msra.mxu0 0.0
    %699 = vmatprep.subr.mxu0 0.0
    %700 = vmatpush2.msra.mxu0 0.0
    %701 = vmatprep.subr.mxu0 0.0
    %702 = vmatpush2.msra.mxu0 0.0
    %703 = vmatprep.subr.mxu0 0.0
    %704 = vmatpush2.msra.mxu0 0.0
    %705 = vmatprep.subr.mxu0 0.0
    %706 = vmatpush2.msra.mxu0 0.0
    %707 = vmatprep.subr.mxu0 0.0
    %708 = vmatpush2.msra.mxu0 0.0
    %709 = vmatprep.subr.mxu0 0.0
    %710 = vmatpush2.msra.mxu0 0.0
    %711 = vmatprep.subr.mxu0 0.0
    %712 = vmatpush2.msra.mxu0 0.0
    %713 = vmatprep.subr.mxu0 0.0
    %714 = vmatpush2.msra.mxu0 0.0
    %715 = vmatprep.subr.mxu0 0.0
    %716 = vmatpush2.msra.mxu0 0.0
    %717 = vmatprep.subr.mxu0 0.0
    %718 = vmatpush2.msra.mxu0 0.0
    %719 = vmatprep.mubr.f32.mxu0 0.0
    %720 = vmatmul.mubr.f32.gmra.mxu0 %v548
    %v721 = vpop.f32.mrf.mxu0
    %v722 = vadd.f32 %v653, %v721
    %v723 = vpop.f32.mrf.mxu0
    %724 = vmatprep.mubr.f32.mxu0 0.0
    %725 = vmatmul.mubr.f32.gmra.mxu0 %v551
    %v726 = vpop.f32.mrf.mxu0
    %v727 = vadd.f32 %v653, %v726
    %v728 = vpop.f32.mrf.mxu0
    %729 = vdwg.mxu0
    %v730 = vmul.f32 %v637, %v722
    %v731 = vmul.f32 %v639, %v727
    %v732 = vadd.f32 %v730, %v247
    %v733 = vadd.f32 %v731, %v252
    %v734 = vsel %vm546, %v732, 0.0
    %735 = vadd.xlane.f32.xlu0 %v734
    %v736 = vpop.xlane.xlu0 %735
    %v737 = vsel %vm546, %v733, 0.0
    %738 = vadd.xlane.f32.xlu0 %v737
    %v739 = vpop.xlane.xlu0 %738
    %v740 = vrcp.pop 64.0
    %v741 = vmul.f32 %v736, %v740
    %v742 = vmul.f32 %v739, %v740
    %v743 = vsub.f32 %v732, %v741
    %v744 = vsub.f32 %v733, %v742
    %v745 = vmul.f32 %v743, %v743
    %v746 = vmul.f32 %v744, %v744
    %v747 = vsel %vm546, %v745, 0.0
    %748 = vadd.xlane.f32.xlu0 %v747
    %v749 = vpop.xlane.xlu0 %748
    %v750 = vsel %vm546, %v746, 0.0
    %751 = vadd.xlane.f32.xlu0 %v750
    %v752 = vpop.xlane.xlu0 %751
    %v753 = vmul.f32 %v749, %v740
    %v754 = vmul.f32 %v752, %v740
    %v755 = vadd.f32 %v753, 1e-05
    %v756 = vadd.f32 %v754, 1e-05
    %v757 = vrsqrt.pop %v755
    %v758 = vrsqrt.pop %v756
    %v759 = vmul.f32 %v743, %v757
    %v760 = vmul.f32 %v744, %v758
    %v761 = vld [vmem:[%s13] sm:$0x1]
    %v763 = vlaneseq
    %v764 = vshrl.u32 %v763, 7
    %v765 = vsub.s32 0, %v764
    %v766 = vrot.slane %v761, %v765
    %v768 = vmul.f32 %v759, %v766
    %v769 = vmul.f32 %v760, %v766
    %v770 = vld [vmem:[%s14] sm:$0x1]
    %v772 = vlaneseq
    %v773 = vshrl.u32 %v772, 7
    %v774 = vsub.s32 0, %v773
    %v775 = vrot.slane %v770, %v774
    %v777 = vadd.f32 %v768, %v775
    %v778 = vadd.f32 %v769, %v775
    %779 = vst.msk [vmem:[#allocation16] sm:$0xff] %vm546, %v777
    %780 = vst.msk [vmem:[#allocation16 + $0x8] sm:$0xff] %vm546, %v778
    // Predicated region
    $region94: #{_grn_pallas.1} parent=1 // pred_check
      _
    $region95: #{_grn_pallas.1} parent=1 // pred_check_branch
      %782 = sbr.rel (0) target = $region97
    $region96: #{_grn_pallas.1} parent=1 // pred_region
      %s784 = ssub.s32 256, 256
      %785 = vsyncadd [#allocation4], %s784
      %s786 = sshll.u32 [#allocation16], 4
      %s787 = int_to_ptr.vmem [resolvable:$true] %s786
      %792 = dma.vmem_to_hbm [thread:$0]  %s787, 256, %s15, [#allocation4], 128, 128, 8
    $region97: #{_grn_pallas.1} parent=1 // pred_fallthru
      _
    // Predicated region
    $region98: #{_grn_pallas.1} parent=1 // pred_check
      _
    $region99: #{_grn_pallas.1} parent=1 // pred_check_branch
      %794 = sbr.rel (0) target = $region101
    $region100: #{_grn_pallas.1} parent=1 // pred_region
      %795 = dma.done [#allocation4], 256
    $region101: #{_grn_pallas.1} parent=1 // pred_fallthru
      _
    %796 = vsyncpa [#allocation3], 1
    %797 = vsyncpa [#allocation6], 1
    %798 = vsyncpa [#allocation9], 1
    %799 = vsyncpa [#allocation12], 1
    %800 = vsyncpa [#allocation15], 1
    %801 = vsyncpa [#allocation4], 1

</llo_original>
